<compile_context>
chip_gen: v7x
topology: tpu7x:2x2x1
jax: 0.10.0
libtpu: 0.0.40
codegen_flags: <defaults>
</compile_context>

<pallas_src>
from functools import partial

import jax
import jax.numpy as jnp
from jax.experimental import pallas as pl
from jax.experimental.pallas import tpu as pltpu


def _round_up(n, m):
    return ((n + m - 1) // m) * m


def gvf_mlp_kernel(x_ref, w1_ref, b1_ref, w2_ref, b2_ref, w3_ref, b3_ref, o_ref):
    # x tile arrives f32; cast to bf16 here (VPU work hidden under the MXU).
    # All accumulation / bias add / ReLU stay in f32.
    x = x_ref[...].astype(jnp.bfloat16)

    h1 = jnp.dot(x, w1_ref[...], preferred_element_type=jnp.float32) + b1_ref[...]
    h1 = jnp.maximum(h1, 0.0).astype(jnp.bfloat16)            # ReLU -> bf16 operand

    h2 = jnp.dot(h1, w2_ref[...], preferred_element_type=jnp.float32) + b2_ref[...]
    h2 = jnp.maximum(h2, 0.0).astype(jnp.bfloat16)            # ReLU -> bf16 operand

    out = jnp.dot(h2, w3_ref[...], preferred_element_type=jnp.float32) + b3_ref[...]
    o_ref[...] = out.astype(o_ref.dtype)                      # bf16 lane-dense store


def prepare_params(params):
    """One-time conversion: bf16 matmul operands, lane-padded w3/b3, 2D f32 biases."""
    w1, b1 = params["w1"], params["b1"]
    w2, b2 = params["w2"], params["b2"]
    w3, b3 = params["w3"], params["b3"]
    h2_dim, d_out = w3.shape
    d_out_p = _round_up(d_out, 128)   # lane-dense output (full vst, not masked)

    w3_pad = jnp.zeros((h2_dim, d_out_p), jnp.float32).at[:, :d_out].set(
        w3.astype(jnp.float32))
    b3_pad = jnp.zeros((1, d_out_p), jnp.float32).at[0, :d_out].set(
        b3.astype(jnp.float32))

    return {
        "w1": w1.astype(jnp.bfloat16),
        "b1": b1.astype(jnp.float32).reshape(1, -1),
        "w2": w2.astype(jnp.bfloat16),
        "b2": b2.astype(jnp.float32).reshape(1, -1),
        "w3": w3_pad.astype(jnp.bfloat16),
        "b3": b3_pad,
    }


@partial(jax.jit, static_argnames=("d_out", "tb"))
def gvf_network_forward(x, prepared, *, d_out, tb=512):
    """x: (B, input_len) float32. prepared: output of prepare_params. Returns (B, d_out) f32."""
    B, d_in = x.shape
    h1_dim = prepared["w1"].shape[1]
    h2_dim = prepared["w2"].shape[1]
    d_out_p = prepared["w3"].shape[1]

    # --- tiling choices ------------------------------------------------------
    # * multiple of 16 (bf16 sublane packing)
    # * at least 2 grid steps when B allows (v7x megacore), never below 16 rows
    tb_r = _round_up(tb, 16)
    two_step_cap = _round_up(max(pl.cdiv(B, 2), 1), 16)
    tb_eff = max(16, min(tb_r, two_step_cap, _round_up(B, 16)))
    B_pad = _round_up(B, tb_eff)
    grid = (B_pad // tb_eff,)

    # Batch pad (only when ragged); fused under this jit with the final slice.
    x_p = x if B_pad == B else jnp.pad(x, ((0, B_pad - B), (0, 0)))

    flops = 2 * B_pad * (d_in * h1_dim + h1_dim * h2_dim + h2_dim * d_out_p)
    bytes_accessed = (
        B_pad * d_in * 4                                               # x (f32 read)
        + (d_in * h1_dim + h1_dim * h2_dim + h2_dim * d_out_p) * 2     # bf16 weights
        + (h1_dim + h2_dim + d_out_p) * 4                              # f32 biases
        + B_pad * d_out_p * 2                                          # bf16 output
    )

    out_p = pl.pallas_call(
        gvf_mlp_kernel,
        out_shape=jax.ShapeDtypeStruct((B_pad, d_out_p), jnp.bfloat16),
        grid_spec=pltpu.PrefetchScalarGridSpec(
            num_scalar_prefetch=0,
            grid=grid,
            in_specs=[
                pl.BlockSpec((tb_eff, d_in), lambda i: (i, 0)),   # x tile (f32)
                pl.BlockSpec((d_in, h1_dim), lambda i: (0, 0)),   # w1 (resident)
                pl.BlockSpec((1, h1_dim), lambda i: (0, 0)),      # b1
                pl.BlockSpec((h1_dim, h2_dim), lambda i: (0, 0)), # w2
                pl.BlockSpec((1, h2_dim), lambda i: (0, 0)),      # b2
                pl.BlockSpec((h2_dim, d_out_p), lambda i: (0, 0)),# w3 (lane-padded)
                pl.BlockSpec((1, d_out_p), lambda i: (0, 0)),     # b3 (lane-padded)
            ],
            out_specs=pl.BlockSpec((tb_eff, d_out_p), lambda i: (i, 0)),
        ),
        compiler_params=pltpu.CompilerParams(
            dimension_semantics=("parallel",),   # batch axis shards across v7x's 2 TCs
        ),
        cost_estimate=pl.CostEstimate(
            flops=flops, transcendentals=0, bytes_accessed=bytes_accessed),
    )(x_p, prepared["w1"], prepared["b1"], prepared["w2"], prepared["b2"],
      prepared["w3"], prepared["b3"])

    # Strip batch padding and output lane padding; back to f32.
    return out_p[:B, :d_out].astype(jnp.float32)


def init_params(key, input_len, output_len):
    """Deterministic synthetic init (PyTorch-Linear-like uniform fan-in scaling)."""
    dims = [(input_len, 512), (512, 256), (256, output_len)]
    params = {}
    for idx, (fan_in, fan_out) in enumerate(dims, start=1):
        key, kw, kb = jax.random.split(key, 3)
        bound = 1.0 / jnp.sqrt(jnp.float32(fan_in))
        params[f"w{idx}"] = jax.random.uniform(
            kw, (fan_in, fan_out), jnp.float32, minval=-bound, maxval=bound)
        params[f"b{idx}"] = jax.random.uniform(
            kb, (fan_out,), jnp.float32, minval=-bound, maxval=bound)
    return params


def reference_forward(x, params):
    """Pure-JAX reference following the same bf16-operand / f32-accumulate path."""
    bf = jnp.bfloat16
    h1 = jnp.dot(x.astype(bf), params["w1"].astype(bf),
                 preferred_element_type=jnp.float32) + params["b1"]
    h1 = jnp.maximum(h1, 0.0)
    h2 = jnp.dot(h1.astype(bf), params["w2"].astype(bf),
                 preferred_element_type=jnp.float32) + params["b2"]
    h2 = jnp.maximum(h2, 0.0)
    return jnp.dot(h2.astype(bf), params["w3"].astype(bf),
                   preferred_element_type=jnp.float32) + params["b3"]


if __name__ == "__main__":
    key = jax.random.PRNGKey(0)
    key, kx, kp, kx2 = jax.random.split(key, 4)

    input_len = 32
    output_len = 8
    raw_params = init_params(kp, input_len, output_len)
    params = prepare_params(raw_params)   # bf16 / lane-padded weights, done once

    # Small toy batch: collapses to a single grid step (tb_eff=16, B padded to 16).
    batch = 8
    x = jax.random.normal(kx, (batch, input_len), jnp.float32)
    out = jax.block_until_ready(gvf_network_forward(x, params, d_out=output_len))
    ref = reference_forward(x, raw_params)
    assert out.shape == (batch, output_len)
    assert jnp.allclose(out, ref, atol=1e-2, rtol=1e-2), "mismatch vs reference (toy batch)"

    # Ragged batch: exercises batch padding + grid=(2,) (two parallel steps).
    batch2 = 40
    x2 = jax.random.normal(kx2, (batch2, input_len), jnp.float32)
    out2 = jax.block_until_ready(gvf_network_forward(x2, params, d_out=output_len))
    ref2 = reference_forward(x2, raw_params)
    assert out2.shape == (batch2, output_len)
    assert jnp.allclose(out2, ref2, atol=1e-2, rtol=1e-2), "mismatch vs reference (ragged batch)"

    print("KERNEL_OK")
</pallas_src>

<mosaic_0001>
module attributes {stable_mosaic.version = 11 : i64} {
  func.func @gvf_mlp_kernel(%arg0: i32, %arg1: memref<16x32xf32, #tpu.memory_space<vmem>>, %arg2: memref<32x512xbf16, #tpu.memory_space<vmem>>, %arg3: memref<1x512xf32, #tpu.memory_space<vmem>>, %arg4: memref<512x256xbf16, #tpu.memory_space<vmem>>, %arg5: memref<1x256xf32, #tpu.memory_space<vmem>>, %arg6: memref<256x128xbf16, #tpu.memory_space<vmem>>, %arg7: memref<1x128xf32, #tpu.memory_space<vmem>>, %arg8: memref<16x128xbf16, #tpu.memory_space<vmem>>) attributes {dimension_semantics = [#tpu.dimension_semantics<parallel>], iteration_bounds = array<i64: 1>, scalar_prefetch = 0 : i64, scratch_operands = 0 : i64, tpu.core_type = #tpu.core_type<tc>, window_params = [{transform_indices = @transform_0, window_bounds = array<i64: 16, 32>}, {pipeline_mode = #tpu.pipeline_mode<synchronous>, transform_indices = @transform_1, window_bounds = array<i64: 32, 512>}, {pipeline_mode = #tpu.pipeline_mode<synchronous>, transform_indices = @transform_2, window_bounds = array<i64: 1, 512>}, {pipeline_mode = #tpu.pipeline_mode<synchronous>, transform_indices = @transform_3, window_bounds = array<i64: 512, 256>}, {pipeline_mode = #tpu.pipeline_mode<synchronous>, transform_indices = @transform_4, window_bounds = array<i64: 1, 256>}, {pipeline_mode = #tpu.pipeline_mode<synchronous>, transform_indices = @transform_5, window_bounds = array<i64: 256, 128>}, {pipeline_mode = #tpu.pipeline_mode<synchronous>, transform_indices = @transform_6, window_bounds = array<i64: 1, 128>}, {transform_indices = @transform_7, window_bounds = array<i64: 16, 128>}]} {
    %c0 = arith.constant 0 : index
    %c0_0 = arith.constant 0 : index
    %0 = vector.load %arg1[%c0, %c0_0] : memref<16x32xf32, #tpu.memory_space<vmem>>, vector<16x32xf32>
    %1 = arith.truncf %0 : vector<16x32xf32> to vector<16x32xbf16>
    %c0_1 = arith.constant 0 : index
    %c0_2 = arith.constant 0 : index
    %2 = vector.load %arg2[%c0_1, %c0_2] : memref<32x512xbf16, #tpu.memory_space<vmem>>, vector<32x512xbf16>
    %cst = arith.constant dense<0.000000e+00> : vector<16x512xf32>
    %3 = tpu.matmul %1, %2, %cst {dimension_numbers = #tpu.dot_dimension_numbers<[1], [0], [0], [1], [0, 0, 1, 1], [], []>} : vector<16x32xbf16>, vector<32x512xbf16>, vector<16x512xf32> -> vector<16x512xf32>
    %c0_3 = arith.constant 0 : index
    %c0_4 = arith.constant 0 : index
    %4 = vector.load %arg3[%c0_3, %c0_4] : memref<1x512xf32, #tpu.memory_space<vmem>>, vector<1x512xf32>
    %5 = vector.broadcast %4 : vector<1x512xf32> to vector<16x512xf32>
    %6 = arith.addf %3, %5 : vector<16x512xf32>
    %cst_5 = arith.constant 0.000000e+00 : f32
    %7 = vector.broadcast %cst_5 : f32 to vector<16x512xf32>
    %8 = arith.maximumf %6, %7 : vector<16x512xf32>
    %9 = arith.truncf %8 : vector<16x512xf32> to vector<16x512xbf16>
    %c0_6 = arith.constant 0 : index
    %c0_7 = arith.constant 0 : index
    %10 = vector.load %arg4[%c0_6, %c0_7] : memref<512x256xbf16, #tpu.memory_space<vmem>>, vector<512x256xbf16>
    %cst_8 = arith.constant dense<0.000000e+00> : vector<16x256xf32>
    %11 = tpu.matmul %9, %10, %cst_8 {dimension_numbers = #tpu.dot_dimension_numbers<[1], [0], [0], [1], [0, 0, 1, 1], [], []>} : vector<16x512xbf16>, vector<512x256xbf16>, vector<16x256xf32> -> vector<16x256xf32>
    %c0_9 = arith.constant 0 : index
    %c0_10 = arith.constant 0 : index
    %12 = vector.load %arg5[%c0_9, %c0_10] : memref<1x256xf32, #tpu.memory_space<vmem>>, vector<1x256xf32>
    %13 = vector.broadcast %12 : vector<1x256xf32> to vector<16x256xf32>
    %14 = arith.addf %11, %13 : vector<16x256xf32>
    %cst_11 = arith.constant 0.000000e+00 : f32
    %15 = vector.broadcast %cst_11 : f32 to vector<16x256xf32>
    %16 = arith.maximumf %14, %15 : vector<16x256xf32>
    %17 = arith.truncf %16 : vector<16x256xf32> to vector<16x256xbf16>
    %c0_12 = arith.constant 0 : index
    %c0_13 = arith.constant 0 : index
    %18 = vector.load %arg6[%c0_12, %c0_13] : memref<256x128xbf16, #tpu.memory_space<vmem>>, vector<256x128xbf16>
    %cst_14 = arith.constant dense<0.000000e+00> : vector<16x128xf32>
    %19 = tpu.matmul %17, %18, %cst_14 {dimension_numbers = #tpu.dot_dimension_numbers<[1], [0], [0], [1], [0, 0, 1, 1], [], []>} : vector<16x256xbf16>, vector<256x128xbf16>, vector<16x128xf32> -> vector<16x128xf32>
    %c0_15 = arith.constant 0 : index
    %c0_16 = arith.constant 0 : index
    %20 = vector.load %arg7[%c0_15, %c0_16] : memref<1x128xf32, #tpu.memory_space<vmem>>, vector<1x128xf32>
    %21 = vector.broadcast %20 : vector<1x128xf32> to vector<16x128xf32>
    %22 = arith.addf %19, %21 : vector<16x128xf32>
    %23 = arith.truncf %22 : vector<16x128xf32> to vector<16x128xbf16>
    %c0_17 = arith.constant 0 : index
    %c0_18 = arith.constant 0 : index
    %24 = vector.load %arg8[%c0_17, %c0_18] : memref<16x128xbf16, #tpu.memory_space<vmem>>, vector<16x128xbf16>
    tpu.vector_store %arg8[%c0_17, %c0_18], %23 {strides = array<i32>} : memref<16x128xbf16, #tpu.memory_space<vmem>>, vector<16x128xbf16>,
    return
  }
  func.func @transform_0(%arg0: i32) -> (i32, i32) {
    %c0_i32 = arith.constant 0 : i32
    %c0_i32_0 = arith.constant 0 : i32
    return %arg0, %c0_i32 : i32, i32
  }
  func.func @transform_1(%arg0: i32) -> (i32, i32) {
    %c0_i32 = arith.constant 0 : i32
    %c0_i32_0 = arith.constant 0 : i32
    %c0_i32_1 = arith.constant 0 : i32
    return %c0_i32, %c0_i32_0 : i32, i32
  }
  func.func @transform_2(%arg0: i32) -> (i32, i32) {
    %c0_i32 = arith.constant 0 : i32
    %c0_i32_0 = arith.constant 0 : i32
    %c0_i32_1 = arith.constant 0 : i32
    return %c0_i32, %c0_i32_0 : i32, i32
  }
  func.func @transform_3(%arg0: i32) -> (i32, i32) {
    %c0_i32 = arith.constant 0 : i32
    %c0_i32_0 = arith.constant 0 : i32
    %c0_i32_1 = arith.constant 0 : i32
    return %c0_i32, %c0_i32_0 : i32, i32
  }
  func.func @transform_4(%arg0: i32) -> (i32, i32) {
    %c0_i32 = arith.constant 0 : i32
    %c0_i32_0 = arith.constant 0 : i32
    %c0_i32_1 = arith.constant 0 : i32
    return %c0_i32, %c0_i32_0 : i32, i32
  }
  func.func @transform_5(%arg0: i32) -> (i32, i32) {
    %c0_i32 = arith.constant 0 : i32
    %c0_i32_0 = arith.constant 0 : i32
    %c0_i32_1 = arith.constant 0 : i32
    return %c0_i32, %c0_i32_0 : i32, i32
  }
  func.func @transform_6(%arg0: i32) -> (i32, i32) {
    %c0_i32 = arith.constant 0 : i32
    %c0_i32_0 = arith.constant 0 : i32
    %c0_i32_1 = arith.constant 0 : i32
    return %c0_i32, %c0_i32_0 : i32, i32
  }
  func.func @transform_7(%arg0: i32) -> (i32, i32) {
    %c0_i32 = arith.constant 0 : i32
    %c0_i32_0 = arith.constant 0 : i32
    return %arg0, %c0_i32 : i32, i32
  }
}

</mosaic_0001>

<llo_original>
// kernel: gvf_network_forward.1
$region0: #{gvf_network_forward.1}
  #allocation0 [shape = 'u32[]', space=smem, size = 0x4, offset = 0x4, fixed_abs, tag = 'smem constant byte address 0x4 - core index']
  #allocation1 [shape = 'u32[144,128]{1,0:T(1,128)}', space=vmem, size = 0x12000, scoped, tag = 'internal scratch']
  %s0 = inlined_call_operand.vmem [shape: f32[16,32], index: 0, kind: input, shape index: {}]
  %s1 = inlined_call_operand.hbm [shape: bf16[32,512], index: 1, kind: input, shape index: {}]
  %s2 = inlined_call_operand.vmem [shape: f32[1,512], index: 2, kind: input, shape index: {}]
  %s3 = inlined_call_operand.hbm [shape: bf16[512,256], index: 3, kind: input, shape index: {}]
  %s4 = inlined_call_operand.vmem [shape: f32[1,256], index: 4, kind: input, shape index: {}]
  %s5 = inlined_call_operand.hbm [shape: bf16[256,128], index: 5, kind: input, shape index: {}]
  %s6 = inlined_call_operand.vmem [shape: f32[1,128], index: 6, kind: input, shape index: {}]
  %s7 = inlined_call_operand.vmem [shape: bf16[16,128], index: 7, kind: output, shape index: {}]
  %s8 = sld [smem:[#allocation0]]
  $region50: #{gvf_network_forward.1} parent=0
    _
  %s10 = ssub.s32 1, %s8
  %s11 = scalar_select 0, %s10, %s8
  $region1: #{gvf_network_forward.1} parent=0
    #allocation2 [shape = 'u8[32768]{0}', space=vmem, size = 0x8000, scoped, tag = 'input window, operand 1, single buffered']
    #allocation3 [shape = 's32[1]{0}', space=sflag, size = 0x4, scoped, tag = 'scoped memory for gvf_network_forward.1']
    #allocation4 [shape = 'u8[262144]{0}', space=vmem, size = 0x40000, scoped, tag = 'input window, operand 3, single buffered']
    #allocation5 [shape = 's32[1]{0}', space=sflag, size = 0x4, scoped, tag = 'scoped memory for gvf_network_forward.1']
    #allocation6 [shape = 'u8[65536]{0}', space=vmem, size = 0x10000, scoped, tag = 'input window, operand 5, single buffered']
    %12 = vsyncpa [#allocation3], 0
    %13 = vsyncpa [#allocation5], 0
    // Predicated region
    $region2: #{gvf_network_forward.1} parent=1 // pred_check
      _
    $region3: #{gvf_network_forward.1} parent=1 // pred_check_branch
      %15 = sbr.rel (0) target = $region5
    $region4: #{gvf_network_forward.1} parent=1 // pred_region
      _
    $region5: #{gvf_network_forward.1} parent=1 // pred_fallthru
      _
    // Predicated region
    $region6: #{gvf_network_forward.1} parent=1 // pred_check
      _
    $region7: #{gvf_network_forward.1} parent=1 // pred_check_branch
      %17 = sbr.rel (0) target = $region9
    $region8: #{gvf_network_forward.1} parent=1 // pred_region
      %s19 = ssub.s32 1024, 1024
      %20 = vsyncadd [#allocation3], %s19
      %s21 = sshll.u32 [#allocation2], 4
      %s22 = int_to_ptr.vmem [resolvable:$true] %s21
      %27 = dma.hbm_to_vmem [thread:$0]  %s1, 1024, %s22, [#allocation3], 256, 256, 16
    $region9: #{gvf_network_forward.1} parent=1 // pred_fallthru
      _
    // Predicated region
    $region10: #{gvf_network_forward.1} parent=1 // pred_check
      _
    $region11: #{gvf_network_forward.1} parent=1 // pred_check_branch
      %29 = sbr.rel (0) target = $region13
    $region12: #{gvf_network_forward.1} parent=1 // pred_region
      _
    $region13: #{gvf_network_forward.1} parent=1 // pred_fallthru
      _
    // Predicated region
    $region14: #{gvf_network_forward.1} parent=1 // pred_check
      _
    $region15: #{gvf_network_forward.1} parent=1 // pred_check_branch
      %31 = sbr.rel (0) target = $region17
    $region16: #{gvf_network_forward.1} parent=1 // pred_region
      %s33 = ssub.s32 8192, 8192
      %34 = vsyncadd [#allocation5], %s33
      %s35 = sshll.u32 [#allocation4], 4
      %s36 = int_to_ptr.vmem [resolvable:$true] %s35
      %41 = dma.hbm_to_vmem [thread:$0]  %s3, 8192, %s36, [#allocation5], 128, 128, 8
    $region17: #{gvf_network_forward.1} parent=1 // pred_fallthru
      _
    // Predicated region
    $region18: #{gvf_network_forward.1} parent=1 // pred_check
      _
    $region19: #{gvf_network_forward.1} parent=1 // pred_check_branch
      %43 = sbr.rel (0) target = $region21
    $region20: #{gvf_network_forward.1} parent=1 // pred_region
      _
    $region21: #{gvf_network_forward.1} parent=1 // pred_fallthru
      _
    // Predicated region
    $region22: #{gvf_network_forward.1} parent=1 // pred_check
      _
    $region23: #{gvf_network_forward.1} parent=1 // pred_check_branch
      %45 = sbr.rel (0) target = $region25
    $region24: #{gvf_network_forward.1} parent=1 // pred_region
      %s47 = ssub.s32 2048, 2048
      %48 = vsyncadd [#allocation5], %s47
      %s49 = sshll.u32 [#allocation6], 4
      %s50 = int_to_ptr.vmem [resolvable:$true] %s49
      %55 = dma.hbm_to_vmem [thread:$0]  %s5, 2048, %s50, [#allocation5], 64, 64, 4
    $region25: #{gvf_network_forward.1} parent=1 // pred_fallthru
      _
    // Predicated region
    $region26: #{gvf_network_forward.1} parent=1 // pred_check
      _
    $region27: #{gvf_network_forward.1} parent=1 // pred_check_branch
      %57 = sbr.rel (0) target = $region29
    $region28: #{gvf_network_forward.1} parent=1 // pred_region
      _
    $region29: #{gvf_network_forward.1} parent=1 // pred_fallthru
      _
    // Predicated region
    $region30: #{gvf_network_forward.1} parent=1 // pred_check
      _
    $region31: #{gvf_network_forward.1} parent=1 // pred_check_branch
      %59 = sbr.rel (0) target = $region33
    $region32: #{gvf_network_forward.1} parent=1 // pred_region
      %60 = dma.done [#allocation3], 1024
    $region33: #{gvf_network_forward.1} parent=1 // pred_fallthru
      _
    // Predicated region
    $region34: #{gvf_network_forward.1} parent=1 // pred_check
      _
    $region35: #{gvf_network_forward.1} parent=1 // pred_check_branch
      %62 = sbr.rel (0) target = $region37
    $region36: #{gvf_network_forward.1} parent=1 // pred_region
      %63 = dma.done [#allocation5], 8192
    $region37: #{gvf_network_forward.1} parent=1 // pred_fallthru
      _
    // Predicated region
    $region38: #{gvf_network_forward.1} parent=1 // pred_check
      _
    $region39: #{gvf_network_forward.1} parent=1 // pred_check_branch
      %65 = sbr.rel (0) target = $region41
    $region40: #{gvf_network_forward.1} parent=1 // pred_region
      %66 = dma.done [#allocation5], 2048
    $region41: #{gvf_network_forward.1} parent=1 // pred_fallthru
      _
    %v68 = vld [vmem:[%s0] sm:$0xff]
    %v69 = vld [vmem:[%s0 + $0x8] sm:$0xff]
    %v70 = vpack.c.bf16 %v69, %v68
    %v71 = vld [vmem:[#allocation2] sm:$0xff]
    %v72 = vld [vmem:[#allocation2 + $0x8] sm:$0xff]
    %v73 = vld [vmem:[#allocation2 + $0x10] sm:$0xff]
    %v74 = vld [vmem:[#allocation2 + $0x18] sm:$0xff]
    %v75 = vld [vmem:[#allocation2 + $0x20] sm:$0xff]
    %v76 = vld [vmem:[#allocation2 + $0x28] sm:$0xff]
    %v77 = vld [vmem:[#allocation2 + $0x30] sm:$0xff]
    %v78 = vld [vmem:[#allocation2 + $0x38] sm:$0xff]
    %v79 = vld [vmem:[%s2] sm:$0xf]
    %v81 = vlaneseq
    %v82 = vshrl.u32 %v81, 7
    %v83 = vsub.s32 0, %v82
    %v84 = vrot.slane %v79, %v83
    %v85 = vlaneseq
    %v86 = vshrl.u32 %v85, 7
    %v87 = vsub.s32 1, %v86
    %v88 = vrot.slane %v79, %v87
    %v89 = vlaneseq
    %v90 = vshrl.u32 %v89, 7
    %v91 = vsub.s32 2, %v90
    %v92 = vrot.slane %v79, %v91
    %v93 = vlaneseq
    %v94 = vshrl.u32 %v93, 7
    %v95 = vsub.s32 3, %v94
    %v96 = vrot.slane %v79, %v95
    %v109 = vunpack.c.l.b16 %v71
    %v110 = vunpack.c.h.b16 %v71
    %v111 = vunpack.c.l.b16 %v72
    %v112 = vunpack.c.h.b16 %v72
    %v113 = vunpack.c.l.b16 %v73
    %v114 = vunpack.c.h.b16 %v73
    %v115 = vunpack.c.l.b16 %v74
    %v116 = vunpack.c.h.b16 %v74
    %v117 = vunpack.c.l.b16 %v75
    %v118 = vunpack.c.h.b16 %v75
    %v119 = vunpack.c.l.b16 %v76
    %v120 = vunpack.c.h.b16 %v76
    %v121 = vunpack.c.l.b16 %v77
    %v122 = vunpack.c.h.b16 %v77
    %v123 = vunpack.c.l.b16 %v78
    %v124 = vunpack.c.h.b16 %v78
    %v125 = vpack.c.b16 %v113, %v109
    %v126 = vpack.c.b16 %v114, %v110
    %v127 = vpack.c.b16 %v115, %v111
    %v128 = vpack.c.b16 %v116, %v112
    %v129 = vpack.c.b16 %v121, %v117
    %v130 = vpack.c.b16 %v122, %v118
    %v131 = vpack.c.b16 %v123, %v119
    %v132 = vpack.c.b16 %v124, %v120
    %vm141 = vcmask 261120
    %v143 = vsel %vm141, %v70, 0
    %145 = vmatprep.subr.bf16.mxu0 %v126
    %146 = vmatpush1.bf16.msra.mxu0 %v125
    %147 = vmatprep.subr.bf16.mxu0 %v130
    %148 = vmatpush1.bf16.msra.mxu0 %v129
    %149 = vmatprep.subr.bf16.mxu0 0
    %150 = vmatpush1.bf16.msra.mxu0 0
    %151 = vmatprep.subr.bf16.mxu0 0
    %152 = vmatpush1.bf16.msra.mxu0 0
    %153 = vmatprep.subr.bf16.mxu0 0
    %154 = vmatpush1.bf16.msra.mxu0 0
    %155 = vmatprep.subr.bf16.mxu0 0
    %156 = vmatpush1.bf16.msra.mxu0 0
    %157 = vmatprep.subr.bf16.mxu0 0
    %158 = vmatpush1.bf16.msra.mxu0 0
    %159 = vmatprep.subr.bf16.mxu0 0
    %160 = vmatpush1.bf16.msra.mxu0 0
    %161 = vmatprep.subr.bf16.mxu0 0
    %162 = vmatpush1.bf16.msra.mxu0 0
    %163 = vmatprep.subr.bf16.mxu0 0
    %164 = vmatpush1.bf16.msra.mxu0 0
    %165 = vmatprep.subr.bf16.mxu0 0
    %166 = vmatpush1.bf16.msra.mxu0 0
    %167 = vmatprep.subr.bf16.mxu0 0
    %168 = vmatpush1.bf16.msra.mxu0 0
    %169 = vmatprep.subr.bf16.mxu0 0
    %170 = vmatpush1.bf16.msra.mxu0 0
    %171 = vmatprep.subr.bf16.mxu0 0
    %172 = vmatpush1.bf16.msra.mxu0 0
    %173 = vmatprep.subr.bf16.mxu0 0
    %174 = vmatpush1.bf16.msra.mxu0 0
    %175 = vmatprep.subr.bf16.mxu0 0
    %176 = vmatpush1.bf16.msra.mxu0 0
    %177 = vmatprep.mubr.bf16.mxu0 0
    %178 = vmatmul.mubr.bf16.gmra.mrb[0].mxu0 %v143
    %v179 = vpop.f32.mrb[0].mxu0
    %v180 = vadd.f32 %v84, %v179
    %v181 = vpop.f32.mrb[0].mxu0
    %v182 = vadd.f32 %v88, %v181
    %v183 = vpop.f32.mrb[0].mxu0
    %v184 = vadd.f32 %v84, %v183
    %v185 = vpop.f32.mrb[0].mxu0
    %v186 = vadd.f32 %v88, %v185
    %187 = vdwg.mxu0
    %188 = vmatprep.subr.bf16.mxu0 %v128
    %189 = vmatpush1.bf16.msra.mxu0 %v127
    %190 = vmatprep.subr.bf16.mxu0 %v132
    %191 = vmatpush1.bf16.msra.mxu0 %v131
    %192 = vmatprep.subr.bf16.mxu0 0
    %193 = vmatpush1.bf16.msra.mxu0 0
    %194 = vmatprep.subr.bf16.mxu0 0
    %195 = vmatpush1.bf16.msra.mxu0 0
    %196 = vmatprep.subr.bf16.mxu0 0
    %197 = vmatpush1.bf16.msra.mxu0 0
    %198 = vmatprep.subr.bf16.mxu0 0
    %199 = vmatpush1.bf16.msra.mxu0 0
    %200 = vmatprep.subr.bf16.mxu0 0
    %201 = vmatpush1.bf16.msra.mxu0 0
    %202 = vmatprep.subr.bf16.mxu0 0
    %203 = vmatpush1.bf16.msra.mxu0 0
    %204 = vmatprep.subr.bf16.mxu0 0
    %205 = vmatpush1.bf16.msra.mxu0 0
    %206 = vmatprep.subr.bf16.mxu0 0
    %207 = vmatpush1.bf16.msra.mxu0 0
    %208 = vmatprep.subr.bf16.mxu0 0
    %209 = vmatpush1.bf16.msra.mxu0 0
    %210 = vmatprep.subr.bf16.mxu0 0
    %211 = vmatpush1.bf16.msra.mxu0 0
    %212 = vmatprep.subr.bf16.mxu0 0
    %213 = vmatpush1.bf16.msra.mxu0 0
    %214 = vmatprep.subr.bf16.mxu0 0
    %215 = vmatpush1.bf16.msra.mxu0 0
    %216 = vmatprep.subr.bf16.mxu0 0
    %217 = vmatpush1.bf16.msra.mxu0 0
    %218 = vmatprep.subr.bf16.mxu0 0
    %219 = vmatpush1.bf16.msra.mxu0 0
    %220 = vmatprep.mubr.bf16.mxu0 0
    %221 = vmatmul.mubr.bf16.gmra.mrb[0].mxu0 %v143
    %v222 = vpop.f32.mrb[0].mxu0
    %v223 = vadd.f32 %v92, %v222
    %v224 = vpop.f32.mrb[0].mxu0
    %v225 = vadd.f32 %v96, %v224
    %v226 = vpop.f32.mrb[0].mxu0
    %v227 = vadd.f32 %v92, %v226
    %v228 = vpop.f32.mrb[0].mxu0
    %v229 = vadd.f32 %v96, %v228
    %230 = vdwg.mxu0
    %v231 = vmax.f32 %v180, 0.0
    %v232 = vmax.f32 %v182, 0.0
    %v233 = vmax.f32 %v223, 0.0
    %v234 = vmax.f32 %v225, 0.0
    %v235 = vmax.f32 %v184, 0.0
    %v236 = vmax.f32 %v186, 0.0
    %v237 = vmax.f32 %v227, 0.0
    %v238 = vmax.f32 %v229, 0.0
    %v239 = vpack.c.bf16 %v235, %v231
    %v240 = vpack.c.bf16 %v236, %v232
    %v241 = vpack.c.bf16 %v237, %v233
    %v242 = vpack.c.bf16 %v238, %v234
    %v243 = vld [vmem:[#allocation4] sm:$0xff]
    %v244 = vld [vmem:[#allocation4 + $0x8] sm:$0xff]
    %v245 = vld [vmem:[#allocation4 + $0x10] sm:$0xff]
    %v246 = vld [vmem:[#allocation4 + $0x18] sm:$0xff]
    %v247 = vld [vmem:[#allocation4 + $0x20] sm:$0xff]
    %v248 = vld [vmem:[#allocation4 + $0x28] sm:$0xff]
    %v249 = vld [vmem:[#allocation4 + $0x30] sm:$0xff]
    %v250 = vld [vmem:[#allocation4 + $0x38] sm:$0xff]
    %v251 = vld [vmem:[#allocation4 + $0x40] sm:$0xff]
    %v252 = vld [vmem:[#allocation4 + $0x48] sm:$0xff]
    %v253 = vld [vmem:[#allocation4 + $0x50] sm:$0xff]
    %v254 = vld [vmem:[#allocation4 + $0x58] sm:$0xff]
    %v255 = vld [vmem:[#allocation4 + $0x60] sm:$0xff]
    %v256 = vld [vmem:[#allocation4 + $0x68] sm:$0xff]
    %v257 = vld [vmem:[#allocation4 + $0x70] sm:$0xff]
    %v258 = vld [vmem:[#allocation4 + $0x78] sm:$0xff]
    %v259 = vld [vmem:[#allocation4 + $0x80] sm:$0xff]
    %v260 = vld [vmem:[#allocation4 + $0x88] sm:$0xff]
    %v261 = vld [vmem:[#allocation4 + $0x90] sm:$0xff]
    %v262 = vld [vmem:[#allocation4 + $0x98] sm:$0xff]
    %v263 = vld [vmem:[#allocation4 + $0xa0] sm:$0xff]
    %v264 = vld [vmem:[#allocation4 + $0xa8] sm:$0xff]
    %v265 = vld [vmem:[#allocation4 + $0xb0] sm:$0xff]
    %v266 = vld [vmem:[#allocation4 + $0xb8] sm:$0xff]
    %v267 = vld [vmem:[#allocation4 + $0xc0] sm:$0xff]
    %v268 = vld [vmem:[#allocation4 + $0xc8] sm:$0xff]
    %v269 = vld [vmem:[#allocation4 + $0xd0] sm:$0xff]
    %v270 = vld [vmem:[#allocation4 + $0xd8] sm:$0xff]
    %v271 = vld [vmem:[#allocation4 + $0xe0] sm:$0xff]
    %v272 = vld [vmem:[#allocation4 + $0xe8] sm:$0xff]
    %v273 = vld [vmem:[#allocation4 + $0xf0] sm:$0xff]
    %v274 = vld [vmem:[#allocation4 + $0xf8] sm:$0xff]
    %v275 = vld [vmem:[#allocation4 + $0x100] sm:$0xff]
    %v276 = vld [vmem:[#allocation4 + $0x108] sm:$0xff]
    %v277 = vld [vmem:[#allocation4 + $0x110] sm:$0xff]
    %v278 = vld [vmem:[#allocation4 + $0x118] sm:$0xff]
    %v279 = vld [vmem:[#allocation4 + $0x120] sm:$0xff]
    %v280 = vld [vmem:[#allocation4 + $0x128] sm:$0xff]
    %v281 = vld [vmem:[#allocation4 + $0x130] sm:$0xff]
    %v282 = vld [vmem:[#allocation4 + $0x138] sm:$0xff]
    %v283 = vld [vmem:[#allocation4 + $0x140] sm:$0xff]
    %v284 = vld [vmem:[#allocation4 + $0x148] sm:$0xff]
    %v285 = vld [vmem:[#allocation4 + $0x150] sm:$0xff]
    %v286 = vld [vmem:[#allocation4 + $0x158] sm:$0xff]
    %v287 = vld [vmem:[#allocation4 + $0x160] sm:$0xff]
    %v288 = vld [vmem:[#allocation4 + $0x168] sm:$0xff]
    %v289 = vld [vmem:[#allocation4 + $0x170] sm:$0xff]
    %v290 = vld [vmem:[#allocation4 + $0x178] sm:$0xff]
    %v291 = vld [vmem:[#allocation4 + $0x180] sm:$0xff]
    %v292 = vld [vmem:[#allocation4 + $0x188] sm:$0xff]
    %v293 = vld [vmem:[#allocation4 + $0x190] sm:$0xff]
    %v294 = vld [vmem:[#allocation4 + $0x198] sm:$0xff]
    %v295 = vld [vmem:[#allocation4 + $0x1a0] sm:$0xff]
    %v296 = vld [vmem:[#allocation4 + $0x1a8] sm:$0xff]
    %v297 = vld [vmem:[#allocation4 + $0x1b0] sm:$0xff]
    %v298 = vld [vmem:[#allocation4 + $0x1b8] sm:$0xff]
    %v299 = vld [vmem:[#allocation4 + $0x1c0] sm:$0xff]
    %v300 = vld [vmem:[#allocation4 + $0x1c8] sm:$0xff]
    %v301 = vld [vmem:[#allocation4 + $0x1d0] sm:$0xff]
    %v302 = vld [vmem:[#allocation4 + $0x1d8] sm:$0xff]
    %v303 = vld [vmem:[#allocation4 + $0x1e0] sm:$0xff]
    %v304 = vld [vmem:[#allocation4 + $0x1e8] sm:$0xff]
    %v305 = vld [vmem:[#allocation4 + $0x1f0] sm:$0xff]
    %v306 = vld [vmem:[#allocation4 + $0x1f8] sm:$0xff]
    %v307 = vld [vmem:[%s4] sm:$0x3]
    %v309 = vlaneseq
    %v310 = vshrl.u32 %v309, 7
    %v311 = vsub.s32 0, %v310
    %v312 = vrot.slane %v307, %v311
    %v313 = vlaneseq
    %v314 = vshrl.u32 %v313, 7
    %v315 = vsub.s32 1, %v314
    %v316 = vrot.slane %v307, %v315
    %v383 = vunpack.c.l.b16 %v243
    %v384 = vunpack.c.h.b16 %v243
    %v385 = vunpack.c.l.b16 %v244
    %v386 = vunpack.c.h.b16 %v244
    %v387 = vunpack.c.l.b16 %v245
    %v388 = vunpack.c.h.b16 %v245
    %v389 = vunpack.c.l.b16 %v246
    %v390 = vunpack.c.h.b16 %v246
    %v391 = vunpack.c.l.b16 %v247
    %v392 = vunpack.c.h.b16 %v247
    %v393 = vunpack.c.l.b16 %v248
    %v394 = vunpack.c.h.b16 %v248
    %v395 = vunpack.c.l.b16 %v249
    %v396 = vunpack.c.h.b16 %v249
    %v397 = vunpack.c.l.b16 %v250
    %v398 = vunpack.c.h.b16 %v250
    %v399 = vunpack.c.l.b16 %v251
    %v400 = vunpack.c.h.b16 %v251
    %v401 = vunpack.c.l.b16 %v252
    %v402 = vunpack.c.h.b16 %v252
    %v403 = vunpack.c.l.b16 %v253
    %v404 = vunpack.c.h.b16 %v253
    %v405 = vunpack.c.l.b16 %v254
    %v406 = vunpack.c.h.b16 %v254
    %v407 = vunpack.c.l.b16 %v255
    %v408 = vunpack.c.h.b16 %v255
    %v409 = vunpack.c.l.b16 %v256
    %v410 = vunpack.c.h.b16 %v256
    %v411 = vunpack.c.l.b16 %v257
    %v412 = vunpack.c.h.b16 %v257
    %v413 = vunpack.c.l.b16 %v258
    %v414 = vunpack.c.h.b16 %v258
    %v415 = vunpack.c.l.b16 %v259
    %v416 = vunpack.c.h.b16 %v259
    %v417 = vunpack.c.l.b16 %v260
    %v418 = vunpack.c.h.b16 %v260
    %v419 = vunpack.c.l.b16 %v261
    %v420 = vunpack.c.h.b16 %v261
    %v421 = vunpack.c.l.b16 %v262
    %v422 = vunpack.c.h.b16 %v262
    %v423 = vunpack.c.l.b16 %v263
    %v424 = vunpack.c.h.b16 %v263
    %v425 = vunpack.c.l.b16 %v264
    %v426 = vunpack.c.h.b16 %v264
    %v427 = vunpack.c.l.b16 %v265
    %v428 = vunpack.c.h.b16 %v265
    %v429 = vunpack.c.l.b16 %v266
    %v430 = vunpack.c.h.b16 %v266
    %v431 = vunpack.c.l.b16 %v267
    %v432 = vunpack.c.h.b16 %v267
    %v433 = vunpack.c.l.b16 %v268
    %v434 = vunpack.c.h.b16 %v268
    %v435 = vunpack.c.l.b16 %v269
    %v436 = vunpack.c.h.b16 %v269
    %v437 = vunpack.c.l.b16 %v270
    %v438 = vunpack.c.h.b16 %v270
    %v439 = vunpack.c.l.b16 %v271
    %v440 = vunpack.c.h.b16 %v271
    %v441 = vunpack.c.l.b16 %v272
    %v442 = vunpack.c.h.b16 %v272
    %v443 = vunpack.c.l.b16 %v273
    %v444 = vunpack.c.h.b16 %v273
    %v445 = vunpack.c.l.b16 %v274
    %v446 = vunpack.c.h.b16 %v274
    %v447 = vunpack.c.l.b16 %v275
    %v448 = vunpack.c.h.b16 %v275
    %v449 = vunpack.c.l.b16 %v276
    %v450 = vunpack.c.h.b16 %v276
    %v451 = vunpack.c.l.b16 %v277
    %v452 = vunpack.c.h.b16 %v277
    %v453 = vunpack.c.l.b16 %v278
    %v454 = vunpack.c.h.b16 %v278
    %v455 = vunpack.c.l.b16 %v279
    %v456 = vunpack.c.h.b16 %v279
    %v457 = vunpack.c.l.b16 %v280
    %v458 = vunpack.c.h.b16 %v280
    %v459 = vunpack.c.l.b16 %v281
    %v460 = vunpack.c.h.b16 %v281
    %v461 = vunpack.c.l.b16 %v282
    %v462 = vunpack.c.h.b16 %v282
    %v463 = vunpack.c.l.b16 %v283
    %v464 = vunpack.c.h.b16 %v283
    %v465 = vunpack.c.l.b16 %v284
    %v466 = vunpack.c.h.b16 %v284
    %v467 = vunpack.c.l.b16 %v285
    %v468 = vunpack.c.h.b16 %v285
    %v469 = vunpack.c.l.b16 %v286
    %v470 = vunpack.c.h.b16 %v286
    %v471 = vunpack.c.l.b16 %v287
    %v472 = vunpack.c.h.b16 %v287
    %v473 = vunpack.c.l.b16 %v288
    %v474 = vunpack.c.h.b16 %v288
    %v475 = vunpack.c.l.b16 %v289
    %v476 = vunpack.c.h.b16 %v289
    %v477 = vunpack.c.l.b16 %v290
    %v478 = vunpack.c.h.b16 %v290
    %v479 = vunpack.c.l.b16 %v291
    %v480 = vunpack.c.h.b16 %v291
    %v481 = vunpack.c.l.b16 %v292
    %v482 = vunpack.c.h.b16 %v292
    %v483 = vunpack.c.l.b16 %v293
    %v484 = vunpack.c.h.b16 %v293
    %v485 = vunpack.c.l.b16 %v294
    %v486 = vunpack.c.h.b16 %v294
    %v487 = vunpack.c.l.b16 %v295
    %v488 = vunpack.c.h.b16 %v295
    %v489 = vunpack.c.l.b16 %v296
    %v490 = vunpack.c.h.b16 %v296
    %v491 = vunpack.c.l.b16 %v297
    %v492 = vunpack.c.h.b16 %v297
    %v493 = vunpack.c.l.b16 %v298
    %v494 = vunpack.c.h.b16 %v298
    %v495 = vunpack.c.l.b16 %v299
    %v496 = vunpack.c.h.b16 %v299
    %v497 = vunpack.c.l.b16 %v300
    %v498 = vunpack.c.h.b16 %v300
    %v499 = vunpack.c.l.b16 %v301
    %v500 = vunpack.c.h.b16 %v301
    %v501 = vunpack.c.l.b16 %v302
    %v502 = vunpack.c.h.b16 %v302
    %v503 = vunpack.c.l.b16 %v303
    %v504 = vunpack.c.h.b16 %v303
    %v505 = vunpack.c.l.b16 %v304
    %v506 = vunpack.c.h.b16 %v304
    %v507 = vunpack.c.l.b16 %v305
    %v508 = vunpack.c.h.b16 %v305
    %v509 = vunpack.c.l.b16 %v306
    %v510 = vunpack.c.h.b16 %v306
    %v511 = vpack.c.b16 %v385, %v383
    %v512 = vpack.c.b16 %v386, %v384
    %v513 = vpack.c.b16 %v389, %v387
    %v514 = vpack.c.b16 %v390, %v388
    %v515 = vpack.c.b16 %v393, %v391
    %v516 = vpack.c.b16 %v394, %v392
    %v517 = vpack.c.b16 %v397, %v395
    %v518 = vpack.c.b16 %v398, %v396
    %v519 = vpack.c.b16 %v401, %v399
    %v520 = vpack.c.b16 %v402, %v400
    %v521 = vpack.c.b16 %v405, %v403
    %v522 = vpack.c.b16 %v406, %v404
    %v523 = vpack.c.b16 %v409, %v407
    %v524 = vpack.c.b16 %v410, %v408
    %v525 = vpack.c.b16 %v413, %v411
    %v526 = vpack.c.b16 %v414, %v412
    %v527 = vpack.c.b16 %v417, %v415
    %v528 = vpack.c.b16 %v418, %v416
    %v529 = vpack.c.b16 %v421, %v419
    %v530 = vpack.c.b16 %v422, %v420
    %v531 = vpack.c.b16 %v425, %v423
    %v532 = vpack.c.b16 %v426, %v424
    %v533 = vpack.c.b16 %v429, %v427
    %v534 = vpack.c.b16 %v430, %v428
    %v535 = vpack.c.b16 %v433, %v431
    %v536 = vpack.c.b16 %v434, %v432
    %v537 = vpack.c.b16 %v437, %v435
    %v538 = vpack.c.b16 %v438, %v436
    %v539 = vpack.c.b16 %v441, %v439
    %v540 = vpack.c.b16 %v442, %v440
    %v541 = vpack.c.b16 %v445, %v443
    %v542 = vpack.c.b16 %v446, %v444
    %v543 = vpack.c.b16 %v449, %v447
    %v544 = vpack.c.b16 %v450, %v448
    %v545 = vpack.c.b16 %v453, %v451
    %v546 = vpack.c.b16 %v454, %v452
    %v547 = vpack.c.b16 %v457, %v455
    %v548 = vpack.c.b16 %v458, %v456
    %v549 = vpack.c.b16 %v461, %v459
    %v550 = vpack.c.b16 %v462, %v460
    %v551 = vpack.c.b16 %v465, %v463
    %v552 = vpack.c.b16 %v466, %v464
    %v553 = vpack.c.b16 %v469, %v467
    %v554 = vpack.c.b16 %v470, %v468
    %v555 = vpack.c.b16 %v473, %v471
    %v556 = vpack.c.b16 %v474, %v472
    %v557 = vpack.c.b16 %v477, %v475
    %v558 = vpack.c.b16 %v478, %v476
    %v559 = vpack.c.b16 %v481, %v479
    %v560 = vpack.c.b16 %v482, %v480
    %v561 = vpack.c.b16 %v485, %v483
    %v562 = vpack.c.b16 %v486, %v484
    %v563 = vpack.c.b16 %v489, %v487
    %v564 = vpack.c.b16 %v490, %v488
    %v565 = vpack.c.b16 %v493, %v491
    %v566 = vpack.c.b16 %v494, %v492
    %v567 = vpack.c.b16 %v497, %v495
    %v568 = vpack.c.b16 %v498, %v496
    %v569 = vpack.c.b16 %v501, %v499
    %v570 = vpack.c.b16 %v502, %v500
    %v571 = vpack.c.b16 %v505, %v503
    %v572 = vpack.c.b16 %v506, %v504
    %v573 = vpack.c.b16 %v509, %v507
    %v574 = vpack.c.b16 %v510, %v508
    %639 = vmatprep.subr.bf16.mxu0 %v512
    %640 = vmatpush1.bf16.msra.mxu0 %v511
    %641 = vmatprep.subr.bf16.mxu0 %v514
    %642 = vmatpush1.bf16.msra.mxu0 %v513
    %643 = vmatprep.subr.bf16.mxu0 %v516
    %644 = vmatpush1.bf16.msra.mxu0 %v515
    %645 = vmatprep.subr.bf16.mxu0 %v518
    %646 = vmatpush1.bf16.msra.mxu0 %v517
    %647 = vmatprep.subr.bf16.mxu0 %v520
    %648 = vmatpush1.bf16.msra.mxu0 %v519
    %649 = vmatprep.subr.bf16.mxu0 %v522
    %650 = vmatpush1.bf16.msra.mxu0 %v521
    %651 = vmatprep.subr.bf16.mxu0 %v524
    %652 = vmatpush1.bf16.msra.mxu0 %v523
    %653 = vmatprep.subr.bf16.mxu0 %v526
    %654 = vmatpush1.bf16.msra.mxu0 %v525
    %655 = vmatprep.subr.bf16.mxu0 %v528
    %656 = vmatpush1.bf16.msra.mxu0 %v527
    %657 = vmatprep.subr.bf16.mxu0 %v530
    %658 = vmatpush1.bf16.msra.mxu0 %v529
    %659 = vmatprep.subr.bf16.mxu0 %v532
    %660 = vmatpush1.bf16.msra.mxu0 %v531
    %661 = vmatprep.subr.bf16.mxu0 %v534
    %662 = vmatpush1.bf16.msra.mxu0 %v533
    %663 = vmatprep.subr.bf16.mxu0 %v536
    %664 = vmatpush1.bf16.msra.mxu0 %v535
    %665 = vmatprep.subr.bf16.mxu0 %v538
    %666 = vmatpush1.bf16.msra.mxu0 %v537
    %667 = vmatprep.subr.bf16.mxu0 %v540
    %668 = vmatpush1.bf16.msra.mxu0 %v539
    %669 = vmatprep.subr.bf16.mxu0 %v542
    %670 = vmatpush1.bf16.msra.mxu0 %v541
    %671 = vmatprep.mubr.bf16.mxu0 %v240
    %672 = vmatmul.mubr.bf16.gmra.mrb[0].mxu0 %v239
    %v673 = vpop.f32.mrb[0].mxu0
    %v674 = vadd.f32 %v312, %v673
    %v675 = vpop.f32.mrb[0].mxu0
    %v676 = vadd.f32 %v316, %v675
    %v677 = vpop.f32.mrb[0].mxu0
    %v678 = vadd.f32 %v312, %v677
    %v679 = vpop.f32.mrb[0].mxu0
    %v680 = vadd.f32 %v316, %v679
    %681 = vdwg.mxu0
    %682 = vmatprep.subr.bf16.mxu0 %v544
    %683 = vmatpush1.bf16.msra.mxu0 %v543
    %684 = vmatprep.subr.bf16.mxu0 %v546
    %685 = vmatpush1.bf16.msra.mxu0 %v545
    %686 = vmatprep.subr.bf16.mxu0 %v548
    %687 = vmatpush1.bf16.msra.mxu0 %v547
    %688 = vmatprep.subr.bf16.mxu0 %v550
    %689 = vmatpush1.bf16.msra.mxu0 %v549
    %690 = vmatprep.subr.bf16.mxu0 %v552
    %691 = vmatpush1.bf16.msra.mxu0 %v551
    %692 = vmatprep.subr.bf16.mxu0 %v554
    %693 = vmatpush1.bf16.msra.mxu0 %v553
    %694 = vmatprep.subr.bf16.mxu0 %v556
    %695 = vmatpush1.bf16.msra.mxu0 %v555
    %696 = vmatprep.subr.bf16.mxu0 %v558
    %697 = vmatpush1.bf16.msra.mxu0 %v557
    %698 = vmatprep.subr.bf16.mxu0 %v560
    %699 = vmatpush1.bf16.msra.mxu0 %v559
    %700 = vmatprep.subr.bf16.mxu0 %v562
    %701 = vmatpush1.bf16.msra.mxu0 %v561
    %702 = vmatprep.subr.bf16.mxu0 %v564
    %703 = vmatpush1.bf16.msra.mxu0 %v563
    %704 = vmatprep.subr.bf16.mxu0 %v566
    %705 = vmatpush1.bf16.msra.mxu0 %v565
    %706 = vmatprep.subr.bf16.mxu0 %v568
    %707 = vmatpush1.bf16.msra.mxu0 %v567
    %708 = vmatprep.subr.bf16.mxu0 %v570
    %709 = vmatpush1.bf16.msra.mxu0 %v569
    %710 = vmatprep.subr.bf16.mxu0 %v572
    %711 = vmatpush1.bf16.msra.mxu0 %v571
    %712 = vmatprep.subr.bf16.mxu0 %v574
    %713 = vmatpush1.bf16.msra.mxu0 %v573
    %714 = vmatprep.mubr.bf16.mxu0 %v242
    %715 = vmatmul.mubr.bf16.gmra.mrb[0].mxu0 %v241
    %v716 = vpop.f32.mrb[0].mxu0
    %v717 = vadd.f32 %v674, %v716
    %v718 = vpop.f32.mrb[0].mxu0
    %v719 = vadd.f32 %v676, %v718
    %v720 = vpop.f32.mrb[0].mxu0
    %v721 = vadd.f32 %v678, %v720
    %v722 = vpop.f32.mrb[0].mxu0
    %v723 = vadd.f32 %v680, %v722
    %724 = vdwg.mxu0
    %v725 = vmax.f32 %v717, 0.0
    %v726 = vmax.f32 %v719, 0.0
    %v727 = vmax.f32 %v721, 0.0
    %v728 = vmax.f32 %v723, 0.0
    %v729 = vpack.c.bf16 %v727, %v725
    %v730 = vpack.c.bf16 %v728, %v726
    %v731 = vld [vmem:[#allocation6] sm:$0xf]
    %v732 = vld [vmem:[#allocation6 + $0x4] sm:$0xf]
    %v733 = vld [vmem:[#allocation6 + $0x8] sm:$0xf]
    %v734 = vld [vmem:[#allocation6 + $0xc] sm:$0xf]
    %v735 = vld [vmem:[#allocation6 + $0x10] sm:$0xf]
    %v736 = vld [vmem:[#allocation6 + $0x14] sm:$0xf]
    %v737 = vld [vmem:[#allocation6 + $0x18] sm:$0xf]
    %v738 = vld [vmem:[#allocation6 + $0x1c] sm:$0xf]
    %v739 = vld [vmem:[#allocation6 + $0x20] sm:$0xf]
    %v740 = vld [vmem:[#allocation6 + $0x24] sm:$0xf]
    %v741 = vld [vmem:[#allocation6 + $0x28] sm:$0xf]
    %v742 = vld [vmem:[#allocation6 + $0x2c] sm:$0xf]
    %v743 = vld [vmem:[#allocation6 + $0x30] sm:$0xf]
    %v744 = vld [vmem:[#allocation6 + $0x34] sm:$0xf]
    %v745 = vld [vmem:[#allocation6 + $0x38] sm:$0xf]
    %v746 = vld [vmem:[#allocation6 + $0x3c] sm:$0xf]
    %v747 = vld [vmem:[#allocation6 + $0x40] sm:$0xf]
    %v748 = vld [vmem:[#allocation6 + $0x44] sm:$0xf]
    %v749 = vld [vmem:[#allocation6 + $0x48] sm:$0xf]
    %v750 = vld [vmem:[#allocation6 + $0x4c] sm:$0xf]
    %v751 = vld [vmem:[#allocation6 + $0x50] sm:$0xf]
    %v752 = vld [vmem:[#allocation6 + $0x54] sm:$0xf]
    %v753 = vld [vmem:[#allocation6 + $0x58] sm:$0xf]
    %v754 = vld [vmem:[#allocation6 + $0x5c] sm:$0xf]
    %v755 = vld [vmem:[#allocation6 + $0x60] sm:$0xf]
    %v756 = vld [vmem:[#allocation6 + $0x64] sm:$0xf]
    %v757 = vld [vmem:[#allocation6 + $0x68] sm:$0xf]
    %v758 = vld [vmem:[#allocation6 + $0x6c] sm:$0xf]
    %v759 = vld [vmem:[#allocation6 + $0x70] sm:$0xf]
    %v760 = vld [vmem:[#allocation6 + $0x74] sm:$0xf]
    %v761 = vld [vmem:[#allocation6 + $0x78] sm:$0xf]
    %v762 = vld [vmem:[#allocation6 + $0x7c] sm:$0xf]
    %v763 = vld [vmem:[%s6] sm:$0x1]
    %v765 = vlaneseq
    %v766 = vshrl.u32 %v765, 7
    %v767 = vsub.s32 0, %v766
    %v768 = vrot.slane %v763, %v767
    %v802 = vunpack.c.l.b16 %v731
    %v803 = vunpack.c.l.b16 %v732
    %v804 = vunpack.c.l.b16 %v733
    %v805 = vunpack.c.l.b16 %v734
    %v806 = vunpack.c.l.b16 %v735
    %v807 = vunpack.c.l.b16 %v736
    %v808 = vunpack.c.l.b16 %v737
    %v809 = vunpack.c.l.b16 %v738
    %v810 = vunpack.c.l.b16 %v739
    %v811 = vunpack.c.l.b16 %v740
    %v812 = vunpack.c.l.b16 %v741
    %v813 = vunpack.c.l.b16 %v742
    %v814 = vunpack.c.l.b16 %v743
    %v815 = vunpack.c.l.b16 %v744
    %v816 = vunpack.c.l.b16 %v745
    %v817 = vunpack.c.l.b16 %v746
    %v818 = vunpack.c.l.b16 %v747
    %v819 = vunpack.c.l.b16 %v748
    %v820 = vunpack.c.l.b16 %v749
    %v821 = vunpack.c.l.b16 %v750
    %v822 = vunpack.c.l.b16 %v751
    %v823 = vunpack.c.l.b16 %v752
    %v824 = vunpack.c.l.b16 %v753
    %v825 = vunpack.c.l.b16 %v754
    %v826 = vunpack.c.l.b16 %v755
    %v827 = vunpack.c.l.b16 %v756
    %v828 = vunpack.c.l.b16 %v757
    %v829 = vunpack.c.l.b16 %v758
    %v830 = vunpack.c.l.b16 %v759
    %v831 = vunpack.c.l.b16 %v760
    %v832 = vunpack.c.l.b16 %v761
    %v833 = vunpack.c.l.b16 %v762
    %v834 = vpack.c.b16 %v803, %v802
    %v835 = vpack.c.b16 %v805, %v804
    %v836 = vpack.c.b16 %v807, %v806
    %v837 = vpack.c.b16 %v809, %v808
    %v838 = vpack.c.b16 %v811, %v810
    %v839 = vpack.c.b16 %v813, %v812
    %v840 = vpack.c.b16 %v815, %v814
    %v841 = vpack.c.b16 %v817, %v816
    %v842 = vpack.c.b16 %v819, %v818
    %v843 = vpack.c.b16 %v821, %v820
    %v844 = vpack.c.b16 %v823, %v822
    %v845 = vpack.c.b16 %v825, %v824
    %v846 = vpack.c.b16 %v827, %v826
    %v847 = vpack.c.b16 %v829, %v828
    %v848 = vpack.c.b16 %v831, %v830
    %v849 = vpack.c.b16 %v833, %v832
    %866 = vmatprep.subr.bf16.mxu0 0
    %867 = vmatpush1.bf16.msra.mxu0 %v834
    %868 = vmatprep.subr.bf16.mxu0 0
    %869 = vmatpush1.bf16.msra.mxu0 %v835
    %870 = vmatprep.subr.bf16.mxu0 0
    %871 = vmatpush1.bf16.msra.mxu0 %v836
    %872 = vmatprep.subr.bf16.mxu0 0
    %873 = vmatpush1.bf16.msra.mxu0 %v837
    %874 = vmatprep.subr.bf16.mxu0 0
    %875 = vmatpush1.bf16.msra.mxu0 %v838
    %876 = vmatprep.subr.bf16.mxu0 0
    %877 = vmatpush1.bf16.msra.mxu0 %v839
    %878 = vmatprep.subr.bf16.mxu0 0
    %879 = vmatpush1.bf16.msra.mxu0 %v840
    %880 = vmatprep.subr.bf16.mxu0 0
    %881 = vmatpush1.bf16.msra.mxu0 %v841
    %882 = vmatprep.subr.bf16.mxu0 0
    %883 = vmatpush1.bf16.msra.mxu0 %v842
    %884 = vmatprep.subr.bf16.mxu0 0
    %885 = vmatpush1.bf16.msra.mxu0 %v843
    %886 = vmatprep.subr.bf16.mxu0 0
    %887 = vmatpush1.bf16.msra.mxu0 %v844
    %888 = vmatprep.subr.bf16.mxu0 0
    %889 = vmatpush1.bf16.msra.mxu0 %v845
    %890 = vmatprep.subr.bf16.mxu0 0
    %891 = vmatpush1.bf16.msra.mxu0 %v846
    %892 = vmatprep.subr.bf16.mxu0 0
    %893 = vmatpush1.bf16.msra.mxu0 %v847
    %894 = vmatprep.subr.bf16.mxu0 0
    %895 = vmatpush1.bf16.msra.mxu0 %v848
    %896 = vmatprep.subr.bf16.mxu0 0
    %897 = vmatpush1.bf16.msra.mxu0 %v849
    %898 = vmatprep.mubr.bf16.mxu0 %v730
    %899 = vmatmul.mubr.bf16.gmra.mrb[0].mxu0 %v729
    %v900 = vpop.f32.mrb[0].mxu0
    %v901 = vadd.f32 %v768, %v900
    %v902 = vpop.f32.mrb[0].mxu0
    %v903 = vpop.f32.mrb[0].mxu0
    %v904 = vadd.f32 %v768, %v903
    %v905 = vpop.f32.mrb[0].mxu0
    %906 = vdwg.mxu0
    %v907 = vpack.c.bf16 %v904, %v901
    %v909 = vunpack.c.l.b16 %v907
    %v910 = vunpack.c.h.b16 %v907
    %v911 = vpack.c.b16 %v909, %v909
    %v912 = vpack.c.b16 %v910, %v910
    %915 = vst [vmem:[%s7] sm:$0xf] %v911
    %916 = vst [vmem:[%s7 + $0x4] sm:$0xf] %v912
    // Predicated region
    $region42: #{gvf_network_forward.1} parent=1 // pred_check
      _
    $region43: #{gvf_network_forward.1} parent=1 // pred_check_branch
      %918 = sbr.rel (0) target = $region45
    $region44: #{gvf_network_forward.1} parent=1 // pred_region
      _
    $region45: #{gvf_network_forward.1} parent=1 // pred_fallthru
      _
    // Predicated region
    $region46: #{gvf_network_forward.1} parent=1 // pred_check
      _
    $region47: #{gvf_network_forward.1} parent=1 // pred_check_branch
      %920 = sbr.rel (0) target = $region49
    $region48: #{gvf_network_forward.1} parent=1 // pred_region
      _
    $region49: #{gvf_network_forward.1} parent=1 // pred_fallthru
      _
    %921 = vsyncpa [#allocation3], 1
    %922 = vsyncpa [#allocation5], 1

</llo_original>
